<compile_context>
chip_gen: v7x
topology: tpu7x:2x2x1
jax: 0.10.0
libtpu: 0.0.40
codegen_flags: <defaults>
</compile_context>

<pallas_src>
import jax
import jax.numpy as jnp
from jax.experimental import pallas as pl
from jax.experimental.pallas import tpu as pltpu

LEAKY_ALPHA = 0.01
HEAD_ARCHITECTURE = [[32, 64], [64, 16], [16, 10]]
BATCH = 8

NUM_CLASSES = HEAD_ARCHITECTURE[-1][1]   # 10
LANES = 128                              # lane-dense padded layer width
NEG_INF = -1e30                          # pad-lane logit suppression


def _round_up(n, m):
    return ((n + m - 1) // m) * m


# --------------------------------------------------------------------------
# Kernel
# --------------------------------------------------------------------------
def _make_kernel(layout):
    """Fused MLP head: N x (Linear + LeakyReLU) then LogSoftmax(dim=1).

    layout: static tuple of (w_row_off, w_rows_used, b_row_off) per layer,
    used to carve the single parameter slab with static (zero-cost) slices.
    """

    def kernel(x_ref, p_ref, o_ref):
        h = x_ref[...]                                   # f32 activations
        for (w_off, w_rows, b_off) in layout:
            w = p_ref[w_off:w_off + w_rows, :]           # [in_pad, 128]
            if h.dtype != w.dtype:                       # bf16 MXU feed (v6e/v7x)
                h = h.astype(w.dtype)
            b = p_ref[b_off:b_off + 1, :].astype(jnp.float32)   # (1, 128)
            # MXU matmul with f32 accumulate; bias + LeakyReLU on the VPU.
            h = jnp.dot(h, w, preferred_element_type=jnp.float32) + b
            h = jnp.maximum(h, LEAKY_ALPHA * h)          # single vmax

        # Numerically stable LogSoftmax over dim=1 (lane axis).  Pad lanes of
        # the last layer carry ~-1e28 (from the baked -1e30 bias) so they
        # underflow to 0 in the exp-sum -- no iota/where mask needed.
        m = jnp.max(h, axis=1, keepdims=True)
        lse = jnp.log(jnp.sum(jnp.exp(h - m), axis=1, keepdims=True)) + m
        o_ref[...] = h - lse

    return kernel


# --------------------------------------------------------------------------
# One-time parameter packing (PyTorch layout -> single aligned VMEM slab)
# --------------------------------------------------------------------------
def prepare_params(params, param_dtype=jnp.float32):
    """Pack all (weight [out,in], bias [out]) pairs into one (R, 128) slab.

    Every weight is stored transposed ([in, out]), its 'in' rows zero-padded
    to the previous layer's padded width (rounded to a multiple of 8) and its
    'out' lanes zero-padded to 128.  Every bias occupies an 8-row strip (row 0
    real, rest zero).  The LAST layer's pad-lane biases are set to -1e30 so
    the in-kernel log-softmax ignores them.  Flip param_dtype to jnp.bfloat16
    on v6e/v7x at large batch (relax tolerances accordingly).

    Returns (slab, layout) where layout is a static tuple of
    (w_row_off, w_rows_used, b_row_off) per layer.
    """
    width = max(LANES, max(_round_up(int(w.shape[0]), LANES) for w, _ in params))
    pieces, layout = [], []
    row = 0
    prev_width = None
    last = len(params) - 1
    for idx, (w, b) in enumerate(params):
        w = jnp.asarray(w, jnp.float32).T                # [in, out]
        b = jnp.asarray(b, jnp.float32).reshape(-1)      # [out]
        fan_in, fan_out = w.shape
        in_rows = fan_in if idx == 0 else prev_width     # activation width fed in
        w_rows = _round_up(in_rows, 8)                   # 8-sublane aligned piece

        w_pad = jnp.zeros((w_rows, width), jnp.float32)
        w_pad = w_pad.at[:fan_in, :fan_out].set(w)
        b_pad = jnp.zeros((8, width), jnp.float32)
        b_pad = b_pad.at[0, :fan_out].set(b)
        if idx == last:
            # Bake pad-lane suppression for the final log-softmax into the bias.
            b_pad = b_pad.at[0, fan_out:].set(NEG_INF)

        layout.append((row, in_rows, row + w_rows))
        pieces.append(w_pad)
        pieces.append(b_pad)
        row += w_rows + 8
        prev_width = width

    slab = jnp.concatenate(pieces, axis=0).astype(param_dtype)
    return slab, tuple(layout)


# --------------------------------------------------------------------------
# Batch tile selection: prefer grid=1; only tile when VMEM forces it.
# --------------------------------------------------------------------------
def _pick_batch_tile(batch, f_in, width, slab_bytes,
                     vmem_budget=16 * 1024 * 1024):
    """Prefer tb == batch (grid=1): block dims equal to the full array dims are
    always legal and avoid ~0.35 us/grid-step overhead on a kernel whose
    compute is nanoseconds.  Only tile when the double-buffered activation /
    output blocks would blow a conservative scoped-VMEM budget (v5e's 16 MiB
    default; safe on v7x's 64 MiB physical VMEM)."""

    def block_bytes(tb):
        return 2 * tb * f_in * 4 + 2 * tb * width * 4 + 2 * slab_bytes

    if block_bytes(batch) <= vmem_budget:
        return batch
    for cand in (16384, 8192, 4096, 2048, 1024, 512, 256, 128, 64, 32, 16, 8):
        if batch % cand == 0 and block_bytes(cand) <= vmem_budget:
            return cand
    return batch  # last resort: single block, raise vmem_limit_bytes below


# --------------------------------------------------------------------------
# Forward wrapper
# --------------------------------------------------------------------------
def make_cnn_head_forward(layout, num_classes):
    """Build a jitted forward closing over the static slab layout."""

    @jax.jit
    def forward(x, slab):
        batch, f_in = x.shape
        slab_rows, width = slab.shape
        slab_bytes = slab.size * slab.dtype.itemsize

        tb = _pick_batch_tile(batch, f_in, width, slab_bytes)
        grid = (batch // tb,) if (tb < batch and batch % tb == 0) else (1,)
        if grid == (1,):
            tb = batch

        est_bytes = 2 * tb * f_in * 4 + 2 * tb * width * 4 + 2 * slab_bytes
        vmem_limit = None
        if est_bytes > 16 * 1024 * 1024:
            vmem_limit = min(int(est_bytes * 5 // 4), 96 * 1024 * 1024)

        in_specs = [
            pl.BlockSpec((tb, f_in), lambda i: (i, 0)),          # activations
            pl.BlockSpec((slab_rows, width), lambda i: (0, 0)),  # grid-invariant params
        ]
        out_specs = pl.BlockSpec((tb, width), lambda i: (i, 0))  # lane-dense (128)

        flops = int(2 * batch * sum(in_rows * width for (_, in_rows, _) in layout))
        transcendentals = int(batch * (width + 1))               # exp per lane + log per row
        bytes_accessed = int(x.size * x.dtype.itemsize + slab_bytes
                             + batch * width * 4)

        out_padded = pl.pallas_call(
            _make_kernel(layout),
            out_shape=jax.ShapeDtypeStruct((batch, width), jnp.float32),
            grid=grid,
            in_specs=in_specs,
            out_specs=out_specs,
            compiler_params=pltpu.CompilerParams(
                dimension_semantics=("parallel",),   # shards tiled batch across v7x TCs
                vmem_limit_bytes=vmem_limit),
            cost_estimate=pl.CostEstimate(
                flops=flops,
                transcendentals=transcendentals,
                bytes_accessed=bytes_accessed),
        )(x, slab)

        # Slice the lane-dense slab back to the real class count (fused under
        # jit).  Consumers that accept the padded slab can skip this to avoid
        # the extra HBM pass at very large batch.
        return out_padded[:, :num_classes]

    return forward


# --------------------------------------------------------------------------
# Test scaffolding
# --------------------------------------------------------------------------
def init_params(key, architecture):
    """Deterministic Xavier-uniform weights + zero biases, PyTorch layout."""
    params = []
    for fan_in, fan_out in architecture:
        key, wkey = jax.random.split(key)
        limit = (6.0 / (fan_in + fan_out)) ** 0.5
        w = jax.random.uniform(
            wkey, (fan_out, fan_in), dtype=jnp.float32, minval=-limit, maxval=limit
        )
        b = jnp.zeros((fan_out,), dtype=jnp.float32)
        params.append((w, b))
    return params


def reference_forward(x, params):
    """Pure-JAX reference of the PyTorch forward for a sanity check."""
    h = x
    for w, b in params:
        h = h @ jnp.asarray(w).T + jnp.asarray(b)
        h = jnp.where(h > 0, h, LEAKY_ALPHA * h)
    return jax.nn.log_softmax(h, axis=1)


if __name__ == "__main__":
    key = jax.random.PRNGKey(0)
    key, xkey = jax.random.split(key)
    x = jax.random.normal(xkey, (BATCH, HEAD_ARCHITECTURE[0][0]), dtype=jnp.float32)

    params = init_params(key, HEAD_ARCHITECTURE)
    slab, layout = prepare_params(params)          # one-time layout conversion
    forward = make_cnn_head_forward(layout, NUM_CLASSES)

    out = jax.block_until_ready(forward(x, slab))

    ref = reference_forward(x, params)
    assert out.shape == (BATCH, NUM_CLASSES)
    assert jnp.allclose(out, ref, atol=1e-5, rtol=1e-5)

    print("KERNEL_OK")
</pallas_src>

<mosaic_0001>
module attributes {stable_mosaic.version = 11 : i64} {
  func.func @kernel(%arg0: i32, %arg1: memref<8x32xf32, #tpu.memory_space<vmem>>, %arg2: memref<312x128xf32, #tpu.memory_space<vmem>>, %arg3: memref<8x128xf32, #tpu.memory_space<vmem>>) attributes {dimension_semantics = [#tpu.dimension_semantics<parallel>], iteration_bounds = array<i64: 1>, scalar_prefetch = 0 : i64, scratch_operands = 0 : i64, tpu.core_type = #tpu.core_type<tc>, window_params = [{transform_indices = @transform_0, window_bounds = array<i64: 8, 32>}, {pipeline_mode = #tpu.pipeline_mode<synchronous>, transform_indices = @transform_1, window_bounds = array<i64: 312, 128>}, {transform_indices = @transform_2, window_bounds = array<i64: 8, 128>}]} {
    %c0 = arith.constant 0 : index
    %c0_0 = arith.constant 0 : index
    %0 = vector.load %arg1[%c0, %c0_0] : memref<8x32xf32, #tpu.memory_space<vmem>>, vector<8x32xf32>
    %c0_1 = arith.constant 0 : index
    %c0_2 = arith.constant 0 : index
    %1 = vector.load %arg2[%c0_1, %c0_2] : memref<312x128xf32, #tpu.memory_space<vmem>>, vector<32x128xf32>
    %c32 = arith.constant 32 : index
    %c0_3 = arith.constant 0 : index
    %2 = vector.load %arg2[%c32, %c0_3] : memref<312x128xf32, #tpu.memory_space<vmem>>, vector<1x128xf32>
    %cst = arith.constant dense<0.000000e+00> : vector<8x128xf32>
    %3 = tpu.matmul %0, %1, %cst {dimension_numbers = #tpu.dot_dimension_numbers<[1], [0], [0], [1], [0, 0, 1, 1], [], []>} : vector<8x32xf32>, vector<32x128xf32>, vector<8x128xf32> -> vector<8x128xf32>
    %4 = vector.broadcast %2 : vector<1x128xf32> to vector<8x128xf32>
    %5 = arith.addf %3, %4 : vector<8x128xf32>
    %cst_4 = arith.constant 0.00999999977 : f32
    %6 = vector.broadcast %cst_4 : f32 to vector<8x128xf32>
    %7 = arith.mulf %6, %5 : vector<8x128xf32>
    %8 = arith.maximumf %5, %7 : vector<8x128xf32>
    %c40 = arith.constant 40 : index
    %c0_5 = arith.constant 0 : index
    %9 = vector.load %arg2[%c40, %c0_5] : memref<312x128xf32, #tpu.memory_space<vmem>>, vector<128x128xf32>
    %c168 = arith.constant 168 : index
    %c0_6 = arith.constant 0 : index
    %10 = vector.load %arg2[%c168, %c0_6] : memref<312x128xf32, #tpu.memory_space<vmem>>, vector<1x128xf32>
    %cst_7 = arith.constant dense<0.000000e+00> : vector<8x128xf32>
    %11 = tpu.matmul %8, %9, %cst_7 {dimension_numbers = #tpu.dot_dimension_numbers<[1], [0], [0], [1], [0, 0, 1, 1], [], []>} : vector<8x128xf32>, vector<128x128xf32>, vector<8x128xf32> -> vector<8x128xf32>
    %12 = vector.broadcast %10 : vector<1x128xf32> to vector<8x128xf32>
    %13 = arith.addf %11, %12 : vector<8x128xf32>
    %cst_8 = arith.constant 0.00999999977 : f32
    %14 = vector.broadcast %cst_8 : f32 to vector<8x128xf32>
    %15 = arith.mulf %14, %13 : vector<8x128xf32>
    %16 = arith.maximumf %13, %15 : vector<8x128xf32>
    %c176 = arith.constant 176 : index
    %c0_9 = arith.constant 0 : index
    %17 = vector.load %arg2[%c176, %c0_9] : memref<312x128xf32, #tpu.memory_space<vmem>>, vector<128x128xf32>
    %c304 = arith.constant 304 : index
    %c0_10 = arith.constant 0 : index
    %18 = vector.load %arg2[%c304, %c0_10] : memref<312x128xf32, #tpu.memory_space<vmem>>, vector<1x128xf32>
    %cst_11 = arith.constant dense<0.000000e+00> : vector<8x128xf32>
    %19 = tpu.matmul %16, %17, %cst_11 {dimension_numbers = #tpu.dot_dimension_numbers<[1], [0], [0], [1], [0, 0, 1, 1], [], []>} : vector<8x128xf32>, vector<128x128xf32>, vector<8x128xf32> -> vector<8x128xf32>
    %20 = vector.broadcast %18 : vector<1x128xf32> to vector<8x128xf32>
    %21 = arith.addf %19, %20 : vector<8x128xf32>
    %cst_12 = arith.constant 0.00999999977 : f32
    %22 = vector.broadcast %cst_12 : f32 to vector<8x128xf32>
    %23 = arith.mulf %22, %21 : vector<8x128xf32>
    %24 = arith.maximumf %21, %23 : vector<8x128xf32>
    %cst_13 = arith.constant dense<0xFF800000> : vector<8xf32>
    %25 = vector.multi_reduction <maximumf>, %24, %cst_13 [1] : vector<8x128xf32> to vector<8xf32>
    %26 = vector.shape_cast %25 : vector<8xf32> to vector<8x1xf32>
    %27 = vector.broadcast %26 : vector<8x1xf32> to vector<8x128xf32>
    %28 = arith.subf %24, %27 : vector<8x128xf32>
    %29 = math.exp %28 : vector<8x128xf32>
    %cst_14 = arith.constant dense<0.000000e+00> : vector<8xf32>
    %30 = vector.multi_reduction <add>, %29, %cst_14 [1] : vector<8x128xf32> to vector<8xf32>
    %31 = vector.shape_cast %30 : vector<8xf32> to vector<8x1xf32>
    %32 = math.log %31 : vector<8x1xf32>
    %33 = arith.addf %32, %26 : vector<8x1xf32>
    %34 = vector.broadcast %33 : vector<8x1xf32> to vector<8x128xf32>
    %35 = arith.subf %24, %34 : vector<8x128xf32>
    %c0_15 = arith.constant 0 : index
    %c0_16 = arith.constant 0 : index
    %36 = vector.load %arg3[%c0_15, %c0_16] : memref<8x128xf32, #tpu.memory_space<vmem>>, vector<8x128xf32>
    tpu.vector_store %arg3[%c0_15, %c0_16], %35 {strides = array<i32>} : memref<8x128xf32, #tpu.memory_space<vmem>>, vector<8x128xf32>,
    return
  }
  func.func @transform_0(%arg0: i32) -> (i32, i32) {
    %c0_i32 = arith.constant 0 : i32
    %c0_i32_0 = arith.constant 0 : i32
    return %arg0, %c0_i32 : i32, i32
  }
  func.func @transform_1(%arg0: i32) -> (i32, i32) {
    %c0_i32 = arith.constant 0 : i32
    %c0_i32_0 = arith.constant 0 : i32
    %c0_i32_1 = arith.constant 0 : i32
    return %c0_i32, %c0_i32_0 : i32, i32
  }
  func.func @transform_2(%arg0: i32) -> (i32, i32) {
    %c0_i32 = arith.constant 0 : i32
    %c0_i32_0 = arith.constant 0 : i32
    return %arg0, %c0_i32 : i32, i32
  }
}

</mosaic_0001>

<llo_original>
// kernel: forward.1
$region0: #{forward.1}
  #allocation0 [shape = 'u32[]', space=smem, size = 0x4, offset = 0x4, fixed_abs, tag = 'smem constant byte address 0x4 - core index']
  #allocation1 [shape = 'u32[144,128]{1,0:T(1,128)}', space=vmem, size = 0x12000, scoped, tag = 'internal scratch']
  %s0 = inlined_call_operand.hbm [shape: f32[8,32], index: 0, kind: input, shape index: {}]
  %s1 = inlined_call_operand.hbm [shape: f32[312,128], index: 1, kind: input, shape index: {}]
  %s2 = inlined_call_operand.hbm [shape: f32[8,128], index: 2, kind: output, shape index: {}]
  %s3 = sld [smem:[#allocation0]]
  $region26: #{forward.1} parent=0
    _
  %s5 = ssub.s32 1, %s3
  %s6 = scalar_select 0, %s5, %s3
  $region1: #{forward.1} parent=0
    #allocation2 [shape = 'u8[4096]{0}', space=vmem, size = 0x1000, scoped, tag = 'input window, operand 0, single buffered']
    #allocation3 [shape = 's32[1]{0}', space=sflag, size = 0x4, scoped, tag = 'scoped memory for forward.1']
    #allocation4 [shape = 's32[1]{0}', space=sflag, size = 0x4, scoped, tag = 'scoped memory for forward.1']
    #allocation5 [shape = 'u8[159744]{0}', space=vmem, size = 0x27000, scoped, tag = 'input window, operand 1, single buffered']
    #allocation6 [shape = 's32[1]{0}', space=sflag, size = 0x4, scoped, tag = 'scoped memory for forward.1']
    #allocation7 [shape = 'u8[4096]{0}', space=vmem, size = 0x1000, scoped, tag = 'output window, operand 0, single buffered']
    %7 = vsyncpa [#allocation3], 0
    %8 = vsyncpa [#allocation6], 0
    %9 = vsyncpa [#allocation4], 0
    // Predicated region
    $region2: #{forward.1} parent=1 // pred_check
      _
    $region3: #{forward.1} parent=1 // pred_check_branch
      %11 = sbr.rel (0) target = $region5
    $region4: #{forward.1} parent=1 // pred_region
      %s13 = ssub.s32 128, 128
      %14 = vsyncadd [#allocation3], %s13
      %s16 = sshll.u32 [#allocation2], 4
      %s17 = int_to_ptr.vmem [resolvable:$true] %s16
      %19 = dma.hbm_to_vmem [thread:$0]  %s0, 128, %s17, [#allocation3]
    $region5: #{forward.1} parent=1 // pred_fallthru
      _
    // Predicated region
    $region6: #{forward.1} parent=1 // pred_check
      _
    $region7: #{forward.1} parent=1 // pred_check_branch
      %21 = sbr.rel (0) target = $region9
    $region8: #{forward.1} parent=1 // pred_region
      %s23 = ssub.s32 4992, 4992
      %24 = vsyncadd [#allocation6], %s23
      %s25 = sshll.u32 [#allocation5], 4
      %s26 = int_to_ptr.vmem [resolvable:$true] %s25
      %31 = dma.hbm_to_vmem [thread:$0]  %s1, 4992, %s26, [#allocation6], 128, 128, 8
    $region9: #{forward.1} parent=1 // pred_fallthru
      _
    // Predicated region
    $region10: #{forward.1} parent=1 // pred_check
      _
    $region11: #{forward.1} parent=1 // pred_check_branch
      %33 = sbr.rel (0) target = $region13
    $region12: #{forward.1} parent=1 // pred_region
      %34 = dma.done [#allocation3], 128
    $region13: #{forward.1} parent=1 // pred_fallthru
      _
    // Predicated region
    $region14: #{forward.1} parent=1 // pred_check
      _
    $region15: #{forward.1} parent=1 // pred_check_branch
      %36 = sbr.rel (0) target = $region17
    $region16: #{forward.1} parent=1 // pred_region
      %37 = dma.done [#allocation6], 4992
    $region17: #{forward.1} parent=1 // pred_fallthru
      _
    %v38 = vld [vmem:[#allocation2] sm:$0xff]
    %v39 = vld [vmem:[#allocation5] sm:$0xff]
    %v40 = vld [vmem:[#allocation5 + $0x8] sm:$0xff]
    %v41 = vld [vmem:[#allocation5 + $0x10] sm:$0xff]
    %v42 = vld [vmem:[#allocation5 + $0x18] sm:$0xff]
    %v43 = vld [vmem:[#allocation5 + $0x20] sm:$0x1]
    %v44 = vlaneseq
    %v45 = vshrl.u32 %v44, 7
    %v46 = vsub.s32 0, %v45
    %v47 = vrot.slane %v43, %v46
    %vm48 = vcmask 261120
    %v50 = vsel %vm48, %v38, 0
    %52 = vmatprep.subr.mxu0 0.0
    %53 = vmatpush1.msra.mxu0 %v39
    %54 = vmatprep.subr.mxu0 0.0
    %55 = vmatpush1.msra.mxu0 %v40
    %56 = vmatprep.subr.mxu0 0.0
    %57 = vmatpush1.msra.mxu0 %v41
    %58 = vmatprep.subr.mxu0 0.0
    %59 = vmatpush1.msra.mxu0 %v42
    %60 = vmatprep.subr.mxu0 0.0
    %61 = vmatpush1.msra.mxu0 0.0
    %62 = vmatprep.subr.mxu0 0.0
    %63 = vmatpush1.msra.mxu0 0.0
    %64 = vmatprep.subr.mxu0 0.0
    %65 = vmatpush1.msra.mxu0 0.0
    %66 = vmatprep.subr.mxu0 0.0
    %67 = vmatpush1.msra.mxu0 0.0
    %68 = vmatprep.subr.mxu0 0.0
    %69 = vmatpush1.msra.mxu0 0.0
    %70 = vmatprep.subr.mxu0 0.0
    %71 = vmatpush1.msra.mxu0 0.0
    %72 = vmatprep.subr.mxu0 0.0
    %73 = vmatpush1.msra.mxu0 0.0
    %74 = vmatprep.subr.mxu0 0.0
    %75 = vmatpush1.msra.mxu0 0.0
    %76 = vmatprep.subr.mxu0 0.0
    %77 = vmatpush1.msra.mxu0 0.0
    %78 = vmatprep.subr.mxu0 0.0
    %79 = vmatpush1.msra.mxu0 0.0
    %80 = vmatprep.subr.mxu0 0.0
    %81 = vmatpush1.msra.mxu0 0.0
    %82 = vmatprep.subr.mxu0 0.0
    %83 = vmatpush1.msra.mxu0 0.0
    %84 = vmatprep.subr.mxu0 0.0
    %85 = vmatpush1.msra.mxu0 0.0
    %86 = vmatprep.subr.mxu0 0.0
    %87 = vmatpush1.msra.mxu0 0.0
    %88 = vmatprep.subr.mxu0 0.0
    %89 = vmatpush1.msra.mxu0 0.0
    %90 = vmatprep.subr.mxu0 0.0
    %91 = vmatpush1.msra.mxu0 0.0
    %92 = vmatprep.subr.mxu0 0.0
    %93 = vmatpush1.msra.mxu0 0.0
    %94 = vmatprep.subr.mxu0 0.0
    %95 = vmatpush1.msra.mxu0 0.0
    %96 = vmatprep.subr.mxu0 0.0
    %97 = vmatpush1.msra.mxu0 0.0
    %98 = vmatprep.subr.mxu0 0.0
    %99 = vmatpush1.msra.mxu0 0.0
    %100 = vmatprep.subr.mxu0 0.0
    %101 = vmatpush1.msra.mxu0 0.0
    %102 = vmatprep.subr.mxu0 0.0
    %103 = vmatpush1.msra.mxu0 0.0
    %104 = vmatprep.subr.mxu0 0.0
    %105 = vmatpush1.msra.mxu0 0.0
    %106 = vmatprep.subr.mxu0 0.0
    %107 = vmatpush1.msra.mxu0 0.0
    %108 = vmatprep.subr.mxu0 0.0
    %109 = vmatpush1.msra.mxu0 0.0
    %110 = vmatprep.subr.mxu0 0.0
    %111 = vmatpush1.msra.mxu0 0.0
    %112 = vmatprep.subr.mxu0 0.0
    %113 = vmatpush1.msra.mxu0 0.0
    %114 = vmatprep.subr.mxu0 0.0
    %115 = vmatpush1.msra.mxu0 0.0
    %116 = vmatprep.mubr.f32.mxu0 0.0
    %117 = vmatmul.mubr.f32.gmra.mrb[0].mxu0 %v50
    %v118 = vpop.f32.mrb[0].mxu0
    %v119 = vadd.f32 %v47, %v118
    %v120 = vpop.f32.mrb[0].mxu0
    %121 = vdwg.mxu0
    %v122 = vmul.f32 %v119, 0.01
    %v123 = vmax.f32 %v119, %v122
    %v124 = vld [vmem:[#allocation5 + $0x28] sm:$0xff]
    %v125 = vld [vmem:[#allocation5 + $0x30] sm:$0xff]
    %v126 = vld [vmem:[#allocation5 + $0x38] sm:$0xff]
    %v127 = vld [vmem:[#allocation5 + $0x40] sm:$0xff]
    %v128 = vld [vmem:[#allocation5 + $0x48] sm:$0xff]
    %v129 = vld [vmem:[#allocation5 + $0x50] sm:$0xff]
    %v130 = vld [vmem:[#allocation5 + $0x58] sm:$0xff]
    %v131 = vld [vmem:[#allocation5 + $0x60] sm:$0xff]
    %v132 = vld [vmem:[#allocation5 + $0x68] sm:$0xff]
    %v133 = vld [vmem:[#allocation5 + $0x70] sm:$0xff]
    %v134 = vld [vmem:[#allocation5 + $0x78] sm:$0xff]
    %v135 = vld [vmem:[#allocation5 + $0x80] sm:$0xff]
    %v136 = vld [vmem:[#allocation5 + $0x88] sm:$0xff]
    %v137 = vld [vmem:[#allocation5 + $0x90] sm:$0xff]
    %v138 = vld [vmem:[#allocation5 + $0x98] sm:$0xff]
    %v139 = vld [vmem:[#allocation5 + $0xa0] sm:$0xff]
    %v140 = vld [vmem:[#allocation5 + $0xa8] sm:$0x1]
    %v141 = vlaneseq
    %v142 = vshrl.u32 %v141, 7
    %v143 = vsub.s32 0, %v142
    %v144 = vrot.slane %v140, %v143
    %145 = vmatprep.subr.mxu0 0.0
    %146 = vmatpush1.msra.mxu0 %v124
    %147 = vmatprep.subr.mxu0 0.0
    %148 = vmatpush1.msra.mxu0 %v125
    %149 = vmatprep.subr.mxu0 0.0
    %150 = vmatpush1.msra.mxu0 %v126
    %151 = vmatprep.subr.mxu0 0.0
    %152 = vmatpush1.msra.mxu0 %v127
    %153 = vmatprep.subr.mxu0 0.0
    %154 = vmatpush1.msra.mxu0 %v128
    %155 = vmatprep.subr.mxu0 0.0
    %156 = vmatpush1.msra.mxu0 %v129
    %157 = vmatprep.subr.mxu0 0.0
    %158 = vmatpush1.msra.mxu0 %v130
    %159 = vmatprep.subr.mxu0 0.0
    %160 = vmatpush1.msra.mxu0 %v131
    %161 = vmatprep.subr.mxu0 0.0
    %162 = vmatpush1.msra.mxu0 %v132
    %163 = vmatprep.subr.mxu0 0.0
    %164 = vmatpush1.msra.mxu0 %v133
    %165 = vmatprep.subr.mxu0 0.0
    %166 = vmatpush1.msra.mxu0 %v134
    %167 = vmatprep.subr.mxu0 0.0
    %168 = vmatpush1.msra.mxu0 %v135
    %169 = vmatprep.subr.mxu0 0.0
    %170 = vmatpush1.msra.mxu0 %v136
    %171 = vmatprep.subr.mxu0 0.0
    %172 = vmatpush1.msra.mxu0 %v137
    %173 = vmatprep.subr.mxu0 0.0
    %174 = vmatpush1.msra.mxu0 %v138
    %175 = vmatprep.subr.mxu0 0.0
    %176 = vmatpush1.msra.mxu0 %v139
    %177 = vmatprep.subr.mxu0 0.0
    %178 = vmatpush1.msra.mxu0 0.0
    %179 = vmatprep.subr.mxu0 0.0
    %180 = vmatpush1.msra.mxu0 0.0
    %181 = vmatprep.subr.mxu0 0.0
    %182 = vmatpush1.msra.mxu0 0.0
    %183 = vmatprep.subr.mxu0 0.0
    %184 = vmatpush1.msra.mxu0 0.0
    %185 = vmatprep.subr.mxu0 0.0
    %186 = vmatpush1.msra.mxu0 0.0
    %187 = vmatprep.subr.mxu0 0.0
    %188 = vmatpush1.msra.mxu0 0.0
    %189 = vmatprep.subr.mxu0 0.0
    %190 = vmatpush1.msra.mxu0 0.0
    %191 = vmatprep.subr.mxu0 0.0
    %192 = vmatpush1.msra.mxu0 0.0
    %193 = vmatprep.subr.mxu0 0.0
    %194 = vmatpush1.msra.mxu0 0.0
    %195 = vmatprep.subr.mxu0 0.0
    %196 = vmatpush1.msra.mxu0 0.0
    %197 = vmatprep.subr.mxu0 0.0
    %198 = vmatpush1.msra.mxu0 0.0
    %199 = vmatprep.subr.mxu0 0.0
    %200 = vmatpush1.msra.mxu0 0.0
    %201 = vmatprep.subr.mxu0 0.0
    %202 = vmatpush1.msra.mxu0 0.0
    %203 = vmatprep.subr.mxu0 0.0
    %204 = vmatpush1.msra.mxu0 0.0
    %205 = vmatprep.subr.mxu0 0.0
    %206 = vmatpush1.msra.mxu0 0.0
    %207 = vmatprep.subr.mxu0 0.0
    %208 = vmatpush1.msra.mxu0 0.0
    %209 = vmatprep.mubr.f32.mxu0 0.0
    %210 = vmatmul.mubr.f32.gmra.mrb[0].mxu0 %v123
    %v211 = vpop.f32.mrb[0].mxu0
    %v212 = vadd.f32 %v144, %v211
    %v213 = vpop.f32.mrb[0].mxu0
    %214 = vdwg.mxu0
    %v215 = vmul.f32 %v212, 0.01
    %v216 = vmax.f32 %v212, %v215
    %v217 = vld [vmem:[#allocation5 + $0xb0] sm:$0xff]
    %v218 = vld [vmem:[#allocation5 + $0xb8] sm:$0xff]
    %v219 = vld [vmem:[#allocation5 + $0xc0] sm:$0xff]
    %v220 = vld [vmem:[#allocation5 + $0xc8] sm:$0xff]
    %v221 = vld [vmem:[#allocation5 + $0xd0] sm:$0xff]
    %v222 = vld [vmem:[#allocation5 + $0xd8] sm:$0xff]
    %v223 = vld [vmem:[#allocation5 + $0xe0] sm:$0xff]
    %v224 = vld [vmem:[#allocation5 + $0xe8] sm:$0xff]
    %v225 = vld [vmem:[#allocation5 + $0xf0] sm:$0xff]
    %v226 = vld [vmem:[#allocation5 + $0xf8] sm:$0xff]
    %v227 = vld [vmem:[#allocation5 + $0x100] sm:$0xff]
    %v228 = vld [vmem:[#allocation5 + $0x108] sm:$0xff]
    %v229 = vld [vmem:[#allocation5 + $0x110] sm:$0xff]
    %v230 = vld [vmem:[#allocation5 + $0x118] sm:$0xff]
    %v231 = vld [vmem:[#allocation5 + $0x120] sm:$0xff]
    %v232 = vld [vmem:[#allocation5 + $0x128] sm:$0xff]
    %v233 = vld [vmem:[#allocation5 + $0x130] sm:$0x1]
    %v234 = vlaneseq
    %v235 = vshrl.u32 %v234, 7
    %v236 = vsub.s32 0, %v235
    %v237 = vrot.slane %v233, %v236
    %238 = vmatprep.subr.mxu0 0.0
    %239 = vmatpush1.msra.mxu0 %v217
    %240 = vmatprep.subr.mxu0 0.0
    %241 = vmatpush1.msra.mxu0 %v218
    %242 = vmatprep.subr.mxu0 0.0
    %243 = vmatpush1.msra.mxu0 %v219
    %244 = vmatprep.subr.mxu0 0.0
    %245 = vmatpush1.msra.mxu0 %v220
    %246 = vmatprep.subr.mxu0 0.0
    %247 = vmatpush1.msra.mxu0 %v221
    %248 = vmatprep.subr.mxu0 0.0
    %249 = vmatpush1.msra.mxu0 %v222
    %250 = vmatprep.subr.mxu0 0.0
    %251 = vmatpush1.msra.mxu0 %v223
    %252 = vmatprep.subr.mxu0 0.0
    %253 = vmatpush1.msra.mxu0 %v224
    %254 = vmatprep.subr.mxu0 0.0
    %255 = vmatpush1.msra.mxu0 %v225
    %256 = vmatprep.subr.mxu0 0.0
    %257 = vmatpush1.msra.mxu0 %v226
    %258 = vmatprep.subr.mxu0 0.0
    %259 = vmatpush1.msra.mxu0 %v227
    %260 = vmatprep.subr.mxu0 0.0
    %261 = vmatpush1.msra.mxu0 %v228
    %262 = vmatprep.subr.mxu0 0.0
    %263 = vmatpush1.msra.mxu0 %v229
    %264 = vmatprep.subr.mxu0 0.0
    %265 = vmatpush1.msra.mxu0 %v230
    %266 = vmatprep.subr.mxu0 0.0
    %267 = vmatpush1.msra.mxu0 %v231
    %268 = vmatprep.subr.mxu0 0.0
    %269 = vmatpush1.msra.mxu0 %v232
    %270 = vmatprep.subr.mxu0 0.0
    %271 = vmatpush1.msra.mxu0 0.0
    %272 = vmatprep.subr.mxu0 0.0
    %273 = vmatpush1.msra.mxu0 0.0
    %274 = vmatprep.subr.mxu0 0.0
    %275 = vmatpush1.msra.mxu0 0.0
    %276 = vmatprep.subr.mxu0 0.0
    %277 = vmatpush1.msra.mxu0 0.0
    %278 = vmatprep.subr.mxu0 0.0
    %279 = vmatpush1.msra.mxu0 0.0
    %280 = vmatprep.subr.mxu0 0.0
    %281 = vmatpush1.msra.mxu0 0.0
    %282 = vmatprep.subr.mxu0 0.0
    %283 = vmatpush1.msra.mxu0 0.0
    %284 = vmatprep.subr.mxu0 0.0
    %285 = vmatpush1.msra.mxu0 0.0
    %286 = vmatprep.subr.mxu0 0.0
    %287 = vmatpush1.msra.mxu0 0.0
    %288 = vmatprep.subr.mxu0 0.0
    %289 = vmatpush1.msra.mxu0 0.0
    %290 = vmatprep.subr.mxu0 0.0
    %291 = vmatpush1.msra.mxu0 0.0
    %292 = vmatprep.subr.mxu0 0.0
    %293 = vmatpush1.msra.mxu0 0.0
    %294 = vmatprep.subr.mxu0 0.0
    %295 = vmatpush1.msra.mxu0 0.0
    %296 = vmatprep.subr.mxu0 0.0
    %297 = vmatpush1.msra.mxu0 0.0
    %298 = vmatprep.subr.mxu0 0.0
    %299 = vmatpush1.msra.mxu0 0.0
    %300 = vmatprep.subr.mxu0 0.0
    %301 = vmatpush1.msra.mxu0 0.0
    %302 = vmatprep.mubr.f32.mxu0 0.0
    %303 = vmatmul.mubr.f32.gmra.mrb[0].mxu0 %v216
    %v304 = vpop.f32.mrb[0].mxu0
    %v305 = vadd.f32 %v237, %v304
    %v306 = vpop.f32.mrb[0].mxu0
    %307 = vdwg.mxu0
    %v308 = vmul.f32 %v305, 0.01
    %v309 = vmax.f32 %v305, %v308
    %310 = vmax.xlane.f32.xlu0 %v309
    %v311 = vpop.xlane.xlu0 %310
    %v312 = vsub.f32 %v309, %v311
    %v313 = vmul.f32 %v312, 1.442695
    %v314 = vpow.pop %v313
    %315 = vadd.xlane.f32.xlu0 %v314
    %v316 = vpop.xlane.xlu0 %315
    %v317 = vlog2.pop %v316
    %v318 = vmul.f32 %v317, 0.6931472
    %v319 = vadd.f32 %v318, %v311
    %v320 = vsub.f32 %v309, %v319
    %321 = vst [vmem:[#allocation7] sm:$0xff] %v320
    // Predicated region
    $region18: #{forward.1} parent=1 // pred_check
      _
    $region19: #{forward.1} parent=1 // pred_check_branch
      %323 = sbr.rel (0) target = $region21
    $region20: #{forward.1} parent=1 // pred_region
      %s325 = ssub.s32 128, 128
      %326 = vsyncadd [#allocation4], %s325
      %s328 = sshll.u32 [#allocation7], 4
      %s329 = int_to_ptr.vmem [resolvable:$true] %s328
      %331 = dma.vmem_to_hbm [thread:$0]  %s329, 128, %s2, [#allocation4]
    $region21: #{forward.1} parent=1 // pred_fallthru
      _
    // Predicated region
    $region22: #{forward.1} parent=1 // pred_check
      _
    $region23: #{forward.1} parent=1 // pred_check_branch
      %333 = sbr.rel (0) target = $region25
    $region24: #{forward.1} parent=1 // pred_region
      %334 = dma.done [#allocation4], 128
    $region25: #{forward.1} parent=1 // pred_fallthru
      _
    %335 = vsyncpa [#allocation3], 1
    %336 = vsyncpa [#allocation6], 1
    %337 = vsyncpa [#allocation4], 1

</llo_original>
